<compile_context>
chip_gen: v6e
topology: v6e:2x2x1
jax: 0.10.0
libtpu: 0.0.40
codegen_flags: <defaults>
</compile_context>

<pallas_src>
import jax
import jax.numpy as jnp
from jax.experimental import pallas as pl
from jax.experimental.pallas import tpu as pltpu


NEG_SLOPE = 0.01   # PyTorch nn.LeakyReLU default
HID = 128          # embedding width == fused head hidden width (64 value | 64 adv)
TB_CAP = 1024      # max batch-tile rows (x+out VMEM footprint stays tiny)


def _leaky_relu(x):
    return jnp.where(x >= 0, x, NEG_SLOPE * x)


def _round_up(n, m):
    return ((n + m - 1) // m) * m


# --------------------------------------------------------------------------
# Kernel: three matmuls, two LeakyReLUs.  The dueling aggregation is already
# folded into (w2, b2), so the last matmul emits final Q-values directly.
# --------------------------------------------------------------------------
def dueling_q_kernel(x_ref, w1_ref, b1_ref, wh_ref, bh_ref, w2_ref, b2_ref,
                     out_ref):
    # Embedding: Linear(state_dim, 128) + LeakyReLU
    emb = jnp.dot(x_ref[...], w1_ref[...],
                  preferred_element_type=jnp.float32) + b1_ref[...]
    emb = _leaky_relu(emb)                                       # (TB, 128)

    # Fused value|advantage hidden layer: one 128-lane matmul + LeakyReLU.
    h = jnp.dot(emb, wh_ref[...],
                preferred_element_type=jnp.float32) + bh_ref[...]
    h = _leaky_relu(h)                                           # (TB, 128)

    # Second stage with the dueling aggregation folded into the weights:
    # directly produces Q-values for the true action_dim lanes.
    out_ref[...] = jnp.dot(h, w2_ref[...],
                           preferred_element_type=jnp.float32) + b2_ref[...]


# --------------------------------------------------------------------------
# One-time parameter packing (hoisted out of the per-step forward).
# --------------------------------------------------------------------------
def pack_params(params):
    """Fuse the value/advantage heads and fold the dueling aggregation.

    Returns a dict of arrays consumed by `dueling_q_forward`:
      w1 (state_dim, 128), b1 (1, 128)
      wh (128, 128)  = [Wv1 | Wa1],  bh (1, 128) = [bv1 | ba1]
      w2 (128, A)    = [Wv2 broadcast ; Wa2 - mean_cols(Wa2)]
      b2 (1, A)      = bv2 + ba2 - mean(ba2)
    """
    action_dim = params["wa2"].shape[1]

    wh = jnp.concatenate([params["wv1"], params["wa1"]], axis=1)        # (128, 128)
    bh = jnp.concatenate([params["bv1"], params["ba1"]], axis=1)        # (1, 128)

    # Dueling fold:  out_j = v + a_j - mean_k(a_k)
    #   value hidden rows  -> Wv2 broadcast across all action columns
    #   adv hidden rows    -> Wa2[:, j] - mean_k Wa2[:, k]
    wa2_centered = params["wa2"] - jnp.mean(params["wa2"], axis=1, keepdims=True)
    wv2_bcast = jnp.broadcast_to(params["wv2"], (params["wv2"].shape[0], action_dim))
    w2 = jnp.concatenate([wv2_bcast, wa2_centered], axis=0)             # (128, A)
    b2 = (params["bv2"] + params["ba2"]
          - jnp.mean(params["ba2"], axis=1, keepdims=True))             # (1, A)

    return dict(w1=params["w1"], b1=params["b1"], wh=wh, bh=bh, w2=w2, b2=b2)


def _choose_batch_tile(batch):
    """Pick a batch tile: big tiles for throughput, >=2 grid steps when the
    batch is large (so both v7x TensorCores get work)."""
    if batch <= 512:
        return batch                      # single step; block == full batch dim
    half = _round_up(pl.cdiv(batch, 2), 8)
    return min(TB_CAP, half)              # 8-aligned, grid >= 2


# --------------------------------------------------------------------------
# Forward: takes pre-packed params (pack once, reuse every step).
# --------------------------------------------------------------------------
def dueling_q_forward(x, packed):
    """x: (B, state_dim) float32.  packed: output of pack_params()."""
    B, state_dim = x.shape
    action_dim = packed["w2"].shape[1]

    TB = _choose_batch_tile(B)
    grid = (pl.cdiv(B, TB),)              # partial last block handled by Pallas

    def weight_spec(shape):
        return pl.BlockSpec(shape, lambda i: (0, 0))   # VMEM-resident across steps

    flops = 2 * B * (state_dim * HID + HID * HID + HID * action_dim)
    bytes_accessed = 4 * (B * state_dim + B * action_dim
                          + state_dim * HID + HID * HID + HID * action_dim
                          + 2 * HID + action_dim)

    out = pl.pallas_call(
        dueling_q_kernel,
        out_shape=jax.ShapeDtypeStruct((B, action_dim), jnp.float32),
        grid=grid,
        in_specs=[
            pl.BlockSpec((TB, state_dim), lambda i: (i, 0)),   # x: tiled over batch
            weight_spec((state_dim, HID)),                     # w1
            weight_spec((1, HID)),                             # b1
            weight_spec((HID, HID)),                           # wh (fused Wv1|Wa1)
            weight_spec((1, HID)),                             # bh
            weight_spec((HID, action_dim)),                    # w2 (dueling-folded)
            weight_spec((1, action_dim)),                      # b2
        ],
        out_specs=pl.BlockSpec((TB, action_dim), lambda i: (i, 0)),
        compiler_params=pltpu.CompilerParams(
            dimension_semantics=("parallel",)),
        cost_estimate=pl.CostEstimate(
            flops=flops, transcendentals=0, bytes_accessed=bytes_accessed),
    )(x, packed["w1"], packed["b1"], packed["wh"], packed["bh"],
      packed["w2"], packed["b2"])

    return out


# --------------------------------------------------------------------------
# Deterministic PyTorch-style init + pure-JAX reference.
# --------------------------------------------------------------------------
def init_params(key, state_dim=2, action_dim=3):
    """Weights stored as (in, out), biases as (1, out)."""
    def linear(key, fan_in, fan_out):
        kw, kb = jax.random.split(key)
        bound = 1.0 / jnp.sqrt(fan_in)
        w = jax.random.uniform(kw, (fan_in, fan_out), jnp.float32, -bound, bound)
        b = jax.random.uniform(kb, (1, fan_out), jnp.float32, -bound, bound)
        return w, b

    keys = jax.random.split(key, 5)
    w1, b1 = linear(keys[0], state_dim, 128)
    wv1, bv1 = linear(keys[1], 128, 64)
    wv2, bv2 = linear(keys[2], 64, 1)
    wa1, ba1 = linear(keys[3], 128, 64)
    wa2, ba2 = linear(keys[4], 64, action_dim)
    return dict(w1=w1, b1=b1, wv1=wv1, bv1=bv1, wv2=wv2, bv2=bv2,
                wa1=wa1, ba1=ba1, wa2=wa2, ba2=ba2)


def reference_forward(x, p):
    """Pure-JAX reference mirroring the PyTorch module (unfused)."""
    emb = _leaky_relu(x @ p["w1"] + p["b1"])
    v = _leaky_relu(emb @ p["wv1"] + p["bv1"]) @ p["wv2"] + p["bv2"]
    a = _leaky_relu(emb @ p["wa1"] + p["ba1"]) @ p["wa2"] + p["ba2"]
    return v + (a - jnp.mean(a, axis=1, keepdims=True))


if __name__ == "__main__":
    key = jax.random.PRNGKey(0)
    k_params, k_x = jax.random.split(key)

    state_dim, action_dim, batch = 2, 3, 8
    params = init_params(k_params, state_dim=state_dim, action_dim=action_dim)
    packed = pack_params(params)          # one-time packing (hoisted out of forward)

    x = jax.random.normal(k_x, (batch, state_dim), jnp.float32)

    out = dueling_q_forward(x, packed)
    out = jax.block_until_ready(out)

    ref = reference_forward(x, params)
    assert out.shape == (batch, action_dim)
    assert jnp.allclose(out, ref, atol=1e-5, rtol=1e-5), "mismatch vs reference"

    print("KERNEL_OK")
</pallas_src>

<mosaic_0001>
module attributes {stable_mosaic.version = 11 : i64} {
  func.func @dueling_q_kernel(%arg0: i32, %arg1: memref<8x2xf32, #tpu.memory_space<vmem>>, %arg2: memref<2x128xf32, #tpu.memory_space<vmem>>, %arg3: memref<1x128xf32, #tpu.memory_space<vmem>>, %arg4: memref<128x128xf32, #tpu.memory_space<vmem>>, %arg5: memref<1x128xf32, #tpu.memory_space<vmem>>, %arg6: memref<128x3xf32, #tpu.memory_space<vmem>>, %arg7: memref<1x3xf32, #tpu.memory_space<vmem>>, %arg8: memref<8x3xf32, #tpu.memory_space<vmem>>) attributes {dimension_semantics = [#tpu.dimension_semantics<parallel>], iteration_bounds = array<i64: 1>, scalar_prefetch = 0 : i64, scratch_operands = 0 : i64, tpu.core_type = #tpu.core_type<tc>, window_params = [{transform_indices = @transform_0, window_bounds = array<i64: 8, 2>}, {pipeline_mode = #tpu.pipeline_mode<synchronous>, transform_indices = @transform_1, window_bounds = array<i64: 2, 128>}, {pipeline_mode = #tpu.pipeline_mode<synchronous>, transform_indices = @transform_2, window_bounds = array<i64: 1, 128>}, {pipeline_mode = #tpu.pipeline_mode<synchronous>, transform_indices = @transform_3, window_bounds = array<i64: 128, 128>}, {pipeline_mode = #tpu.pipeline_mode<synchronous>, transform_indices = @transform_4, window_bounds = array<i64: 1, 128>}, {pipeline_mode = #tpu.pipeline_mode<synchronous>, transform_indices = @transform_5, window_bounds = array<i64: 128, 3>}, {pipeline_mode = #tpu.pipeline_mode<synchronous>, transform_indices = @transform_6, window_bounds = array<i64: 1, 3>}, {transform_indices = @transform_7, window_bounds = array<i64: 8, 3>}]} {
    %c0 = arith.constant 0 : index
    %c0_0 = arith.constant 0 : index
    %0 = vector.load %arg1[%c0, %c0_0] : memref<8x2xf32, #tpu.memory_space<vmem>>, vector<8x2xf32>
    %c0_1 = arith.constant 0 : index
    %c0_2 = arith.constant 0 : index
    %1 = vector.load %arg2[%c0_1, %c0_2] : memref<2x128xf32, #tpu.memory_space<vmem>>, vector<2x128xf32>
    %cst = arith.constant dense<0.000000e+00> : vector<8x128xf32>
    %2 = tpu.matmul %0, %1, %cst {dimension_numbers = #tpu.dot_dimension_numbers<[1], [0], [0], [1], [0, 0, 1, 1], [], []>} : vector<8x2xf32>, vector<2x128xf32>, vector<8x128xf32> -> vector<8x128xf32>
    %c0_3 = arith.constant 0 : index
    %c0_4 = arith.constant 0 : index
    %3 = vector.load %arg3[%c0_3, %c0_4] : memref<1x128xf32, #tpu.memory_space<vmem>>, vector<1x128xf32>
    %4 = vector.broadcast %3 : vector<1x128xf32> to vector<8x128xf32>
    %5 = arith.addf %2, %4 : vector<8x128xf32>
    %cst_5 = arith.constant 0.000000e+00 : f32
    %6 = vector.broadcast %cst_5 : f32 to vector<8x128xf32>
    %7 = arith.cmpf oge, %5, %6 : vector<8x128xf32>
    %cst_6 = arith.constant 0.00999999977 : f32
    %8 = vector.broadcast %cst_6 : f32 to vector<8x128xf32>
    %9 = arith.mulf %8, %5 : vector<8x128xf32>
    %10 = arith.select %7, %5, %9 : vector<8x128xi1>, vector<8x128xf32>
    %c0_7 = arith.constant 0 : index
    %c0_8 = arith.constant 0 : index
    %11 = vector.load %arg4[%c0_7, %c0_8] : memref<128x128xf32, #tpu.memory_space<vmem>>, vector<128x128xf32>
    %cst_9 = arith.constant dense<0.000000e+00> : vector<8x128xf32>
    %12 = tpu.matmul %10, %11, %cst_9 {dimension_numbers = #tpu.dot_dimension_numbers<[1], [0], [0], [1], [0, 0, 1, 1], [], []>} : vector<8x128xf32>, vector<128x128xf32>, vector<8x128xf32> -> vector<8x128xf32>
    %c0_10 = arith.constant 0 : index
    %c0_11 = arith.constant 0 : index
    %13 = vector.load %arg5[%c0_10, %c0_11] : memref<1x128xf32, #tpu.memory_space<vmem>>, vector<1x128xf32>
    %14 = vector.broadcast %13 : vector<1x128xf32> to vector<8x128xf32>
    %15 = arith.addf %12, %14 : vector<8x128xf32>
    %cst_12 = arith.constant 0.000000e+00 : f32
    %16 = vector.broadcast %cst_12 : f32 to vector<8x128xf32>
    %17 = arith.cmpf oge, %15, %16 : vector<8x128xf32>
    %cst_13 = arith.constant 0.00999999977 : f32
    %18 = vector.broadcast %cst_13 : f32 to vector<8x128xf32>
    %19 = arith.mulf %18, %15 : vector<8x128xf32>
    %20 = arith.select %17, %15, %19 : vector<8x128xi1>, vector<8x128xf32>
    %c0_14 = arith.constant 0 : index
    %c0_15 = arith.constant 0 : index
    %21 = vector.load %arg6[%c0_14, %c0_15] : memref<128x3xf32, #tpu.memory_space<vmem>>, vector<128x3xf32>
    %cst_16 = arith.constant dense<0.000000e+00> : vector<8x3xf32>
    %22 = tpu.matmul %20, %21, %cst_16 {dimension_numbers = #tpu.dot_dimension_numbers<[1], [0], [0], [1], [0, 0, 1, 1], [], []>} : vector<8x128xf32>, vector<128x3xf32>, vector<8x3xf32> -> vector<8x3xf32>
    %c0_17 = arith.constant 0 : index
    %c0_18 = arith.constant 0 : index
    %23 = vector.load %arg7[%c0_17, %c0_18] : memref<1x3xf32, #tpu.memory_space<vmem>>, vector<1x3xf32>
    %24 = vector.broadcast %23 : vector<1x3xf32> to vector<8x3xf32>
    %25 = arith.addf %22, %24 : vector<8x3xf32>
    %c0_19 = arith.constant 0 : index
    %c0_20 = arith.constant 0 : index
    %26 = vector.load %arg8[%c0_19, %c0_20] : memref<8x3xf32, #tpu.memory_space<vmem>>, vector<8x3xf32>
    tpu.vector_store %arg8[%c0_19, %c0_20], %25 {strides = array<i32>} : memref<8x3xf32, #tpu.memory_space<vmem>>, vector<8x3xf32>,
    return
  }
  func.func @transform_0(%arg0: i32) -> (i32, i32) {
    %c0_i32 = arith.constant 0 : i32
    %c0_i32_0 = arith.constant 0 : i32
    return %arg0, %c0_i32 : i32, i32
  }
  func.func @transform_1(%arg0: i32) -> (i32, i32) {
    %c0_i32 = arith.constant 0 : i32
    %c0_i32_0 = arith.constant 0 : i32
    %c0_i32_1 = arith.constant 0 : i32
    return %c0_i32, %c0_i32_0 : i32, i32
  }
  func.func @transform_2(%arg0: i32) -> (i32, i32) {
    %c0_i32 = arith.constant 0 : i32
    %c0_i32_0 = arith.constant 0 : i32
    %c0_i32_1 = arith.constant 0 : i32
    return %c0_i32, %c0_i32_0 : i32, i32
  }
  func.func @transform_3(%arg0: i32) -> (i32, i32) {
    %c0_i32 = arith.constant 0 : i32
    %c0_i32_0 = arith.constant 0 : i32
    %c0_i32_1 = arith.constant 0 : i32
    return %c0_i32, %c0_i32_0 : i32, i32
  }
  func.func @transform_4(%arg0: i32) -> (i32, i32) {
    %c0_i32 = arith.constant 0 : i32
    %c0_i32_0 = arith.constant 0 : i32
    %c0_i32_1 = arith.constant 0 : i32
    return %c0_i32, %c0_i32_0 : i32, i32
  }
  func.func @transform_5(%arg0: i32) -> (i32, i32) {
    %c0_i32 = arith.constant 0 : i32
    %c0_i32_0 = arith.constant 0 : i32
    %c0_i32_1 = arith.constant 0 : i32
    return %c0_i32, %c0_i32_0 : i32, i32
  }
  func.func @transform_6(%arg0: i32) -> (i32, i32) {
    %c0_i32 = arith.constant 0 : i32
    %c0_i32_0 = arith.constant 0 : i32
    %c0_i32_1 = arith.constant 0 : i32
    return %c0_i32, %c0_i32_0 : i32, i32
  }
  func.func @transform_7(%arg0: i32) -> (i32, i32) {
    %c0_i32 = arith.constant 0 : i32
    %c0_i32_0 = arith.constant 0 : i32
    return %arg0, %c0_i32 : i32, i32
  }
}

</mosaic_0001>

<llo_original>
// kernel: tpu_custom_call.1
$region0: #{tpu_custom_call.1}
  #allocation0 [shape = 'u32[]', space=smem, size = 0x4, offset = 0x4, fixed_abs, tag = 'smem constant byte address 0x4 - core index']
  #allocation1 [shape = 'u32[144,128]{1,0:T(1,128)}', space=vmem, size = 0x12000, scoped, tag = 'internal scratch']
  %s0 = inlined_call_operand.vmem [shape: f32[8,2], index: 0, kind: input, shape index: {}]
  %s1 = inlined_call_operand.vmem [shape: f32[2,128], index: 1, kind: input, shape index: {}]
  %s2 = inlined_call_operand.vmem [shape: f32[1,128], index: 2, kind: input, shape index: {}]
  %s3 = inlined_call_operand.vmem [shape: f32[128,128], index: 3, kind: input, shape index: {}]
  %s4 = inlined_call_operand.vmem [shape: f32[1,128], index: 4, kind: input, shape index: {}]
  %s5 = inlined_call_operand.vmem [shape: f32[128,3], index: 5, kind: input, shape index: {}]
  %s6 = inlined_call_operand.vmem [shape: f32[1,3], index: 6, kind: input, shape index: {}]
  %s7 = inlined_call_operand.vmem [shape: f32[8,3], index: 7, kind: output, shape index: {}]
  %s8 = sld [smem:[#allocation0]]
  $region38: #{tpu_custom_call.1} parent=0
    _
  %s10 = ssub.s32 1, %s8
  %s11 = scalar_select 0, %s10, %s8
  // Predicated region
  $region2: #{tpu_custom_call.1} parent=0 // pred_check
    _
  $region3: #{tpu_custom_call.1} parent=0 // pred_check_branch
    %13 = sbr.rel (0) target = $region5
  $region4: #{tpu_custom_call.1} parent=0 // pred_region
    _
  $region5: #{tpu_custom_call.1} parent=0 // pred_fallthru
    _
  // Predicated region
  $region6: #{tpu_custom_call.1} parent=0 // pred_check
    _
  $region7: #{tpu_custom_call.1} parent=0 // pred_check_branch
    %15 = sbr.rel (0) target = $region9
  $region8: #{tpu_custom_call.1} parent=0 // pred_region
    _
  $region9: #{tpu_custom_call.1} parent=0 // pred_fallthru
    _
  // Predicated region
  $region10: #{tpu_custom_call.1} parent=0 // pred_check
    _
  $region11: #{tpu_custom_call.1} parent=0 // pred_check_branch
    %17 = sbr.rel (0) target = $region13
  $region12: #{tpu_custom_call.1} parent=0 // pred_region
    _
  $region13: #{tpu_custom_call.1} parent=0 // pred_fallthru
    _
  // Predicated region
  $region14: #{tpu_custom_call.1} parent=0 // pred_check
    _
  $region15: #{tpu_custom_call.1} parent=0 // pred_check_branch
    %19 = sbr.rel (0) target = $region17
  $region16: #{tpu_custom_call.1} parent=0 // pred_region
    _
  $region17: #{tpu_custom_call.1} parent=0 // pred_fallthru
    _
  // Predicated region
  $region18: #{tpu_custom_call.1} parent=0 // pred_check
    _
  $region19: #{tpu_custom_call.1} parent=0 // pred_check_branch
    %21 = sbr.rel (0) target = $region21
  $region20: #{tpu_custom_call.1} parent=0 // pred_region
    _
  $region21: #{tpu_custom_call.1} parent=0 // pred_fallthru
    _
  // Predicated region
  $region22: #{tpu_custom_call.1} parent=0 // pred_check
    _
  $region23: #{tpu_custom_call.1} parent=0 // pred_check_branch
    %23 = sbr.rel (0) target = $region25
  $region24: #{tpu_custom_call.1} parent=0 // pred_region
    _
  $region25: #{tpu_custom_call.1} parent=0 // pred_fallthru
    _
  // Predicated region
  $region26: #{tpu_custom_call.1} parent=0 // pred_check
    _
  $region27: #{tpu_custom_call.1} parent=0 // pred_check_branch
    %25 = sbr.rel (0) target = $region29
  $region28: #{tpu_custom_call.1} parent=0 // pred_region
    _
  $region29: #{tpu_custom_call.1} parent=0 // pred_fallthru
    _
  %v26 = vld [vmem:[%s0] sm:$0xff]
  %v27 = vld [vmem:[%s1] sm:$0x3]
  %v28 = vld [vmem:[%s2] sm:$0x1]
  %v30 = vlaneseq
  %v31 = vshrl.u32 %v30, 7
  %v32 = vsub.s32 0, %v31
  %v33 = vrot.slane %v28, %v32
  %vm35 = vcmask 15360
  %v37 = vsel %vm35, %v26, 0
  %vm39 = vcmask 1041408
  %v41 = vsel %vm39, %v27, 0
  %43 = vmatprep.subr.mxu0 0.0
  %44 = vmatpush1.msra.mxu0 0.0
  %45 = vmatprep.subr.mxu0 0.0
  %46 = vmatpush1.msra.mxu0 0.0
  %47 = vmatprep.subr.mxu0 0.0
  %48 = vmatpush1.msra.mxu0 0.0
  %49 = vmatprep.subr.mxu0 0.0
  %50 = vmatpush1.msra.mxu0 0.0
  %51 = vmatprep.subr.mxu0 0.0
  %52 = vmatpush1.msra.mxu0 0.0
  %53 = vmatprep.subr.mxu0 0.0
  %54 = vmatpush1.msra.mxu0 0.0
  %55 = vmatprep.subr.mxu0 0.0
  %56 = vmatpush1.msra.mxu0 0.0
  %57 = vmatprep.subr.mxu0 0.0
  %58 = vmatpush1.msra.mxu0 0.0
  %59 = vmatprep.subr.mxu0 0.0
  %60 = vmatpush1.msra.mxu0 0.0
  %61 = vmatprep.subr.mxu0 0.0
  %62 = vmatpush1.msra.mxu0 0.0
  %63 = vmatprep.subr.mxu0 0.0
  %64 = vmatpush1.msra.mxu0 0.0
  %65 = vmatprep.subr.mxu0 0.0
  %66 = vmatpush1.msra.mxu0 0.0
  %67 = vmatprep.subr.mxu0 0.0
  %68 = vmatpush1.msra.mxu0 0.0
  %69 = vmatprep.subr.mxu0 0.0
  %70 = vmatpush1.msra.mxu0 0.0
  %71 = vmatprep.subr.mxu0 0.0
  %72 = vmatpush1.msra.mxu0 0.0
  %73 = vmatprep.subr.mxu0 0.0
  %74 = vmatpush1.msra.mxu0 %v41
  %75 = vmatprep.subr.mxu0 0.0
  %76 = vmatpush2.msra.mxu0 0.0
  %77 = vmatprep.subr.mxu0 0.0
  %78 = vmatpush2.msra.mxu0 0.0
  %79 = vmatprep.subr.mxu0 0.0
  %80 = vmatpush2.msra.mxu0 0.0
  %81 = vmatprep.subr.mxu0 0.0
  %82 = vmatpush2.msra.mxu0 0.0
  %83 = vmatprep.subr.mxu0 0.0
  %84 = vmatpush2.msra.mxu0 0.0
  %85 = vmatprep.subr.mxu0 0.0
  %86 = vmatpush2.msra.mxu0 0.0
  %87 = vmatprep.subr.mxu0 0.0
  %88 = vmatpush2.msra.mxu0 0.0
  %89 = vmatprep.subr.mxu0 0.0
  %90 = vmatpush2.msra.mxu0 0.0
  %91 = vmatprep.subr.mxu0 0.0
  %92 = vmatpush2.msra.mxu0 0.0
  %93 = vmatprep.subr.mxu0 0.0
  %94 = vmatpush2.msra.mxu0 0.0
  %95 = vmatprep.subr.mxu0 0.0
  %96 = vmatpush2.msra.mxu0 0.0
  %97 = vmatprep.subr.mxu0 0.0
  %98 = vmatpush2.msra.mxu0 0.0
  %99 = vmatprep.subr.mxu0 0.0
  %100 = vmatpush2.msra.mxu0 0.0
  %101 = vmatprep.subr.mxu0 0.0
  %102 = vmatpush2.msra.mxu0 0.0
  %103 = vmatprep.subr.mxu0 0.0
  %104 = vmatpush2.msra.mxu0 0.0
  %105 = vmatprep.subr.mxu0 0.0
  %106 = vmatpush2.msra.mxu0 0.0
  %107 = vmatprep.mubr.f32.mxu0 0.0
  %108 = vmatmul.mubr.f32.gmra.mxu0 %v37
  %v109 = vpop.f32.mrf.mxu0
  %v110 = vadd.f32 %v33, %v109
  %v111 = vpop.f32.mrf.mxu0
  %112 = vdwg.mxu0
  %vm113 = vcmp.ge.f32.partialorder %v110, 0.0
  %v114 = vmul.f32 %v110, 0.01
  %v115 = vsel %vm113, %v110, %v114
  %v116 = vld [vmem:[%s3] sm:$0xff]
  %v117 = vld [vmem:[%s3 + $0x8] sm:$0xff]
  %v118 = vld [vmem:[%s3 + $0x10] sm:$0xff]
  %v119 = vld [vmem:[%s3 + $0x18] sm:$0xff]
  %v120 = vld [vmem:[%s3 + $0x20] sm:$0xff]
  %v121 = vld [vmem:[%s3 + $0x28] sm:$0xff]
  %v122 = vld [vmem:[%s3 + $0x30] sm:$0xff]
  %v123 = vld [vmem:[%s3 + $0x38] sm:$0xff]
  %v124 = vld [vmem:[%s3 + $0x40] sm:$0xff]
  %v125 = vld [vmem:[%s3 + $0x48] sm:$0xff]
  %v126 = vld [vmem:[%s3 + $0x50] sm:$0xff]
  %v127 = vld [vmem:[%s3 + $0x58] sm:$0xff]
  %v128 = vld [vmem:[%s3 + $0x60] sm:$0xff]
  %v129 = vld [vmem:[%s3 + $0x68] sm:$0xff]
  %v130 = vld [vmem:[%s3 + $0x70] sm:$0xff]
  %v131 = vld [vmem:[%s3 + $0x78] sm:$0xff]
  %v132 = vld [vmem:[%s4] sm:$0x1]
  %v134 = vlaneseq
  %v135 = vshrl.u32 %v134, 7
  %v136 = vsub.s32 0, %v135
  %v137 = vrot.slane %v132, %v136
  %139 = vmatprep.subr.mxu0 0.0
  %140 = vmatpush1.msra.mxu0 %v131
  %141 = vmatprep.subr.mxu0 0.0
  %142 = vmatpush1.msra.mxu0 %v130
  %143 = vmatprep.subr.mxu0 0.0
  %144 = vmatpush1.msra.mxu0 %v129
  %145 = vmatprep.subr.mxu0 0.0
  %146 = vmatpush1.msra.mxu0 %v128
  %147 = vmatprep.subr.mxu0 0.0
  %148 = vmatpush1.msra.mxu0 %v127
  %149 = vmatprep.subr.mxu0 0.0
  %150 = vmatpush1.msra.mxu0 %v126
  %151 = vmatprep.subr.mxu0 0.0
  %152 = vmatpush1.msra.mxu0 %v125
  %153 = vmatprep.subr.mxu0 0.0
  %154 = vmatpush1.msra.mxu0 %v124
  %155 = vmatprep.subr.mxu0 0.0
  %156 = vmatpush1.msra.mxu0 %v123
  %157 = vmatprep.subr.mxu0 0.0
  %158 = vmatpush1.msra.mxu0 %v122
  %159 = vmatprep.subr.mxu0 0.0
  %160 = vmatpush1.msra.mxu0 %v121
  %161 = vmatprep.subr.mxu0 0.0
  %162 = vmatpush1.msra.mxu0 %v120
  %163 = vmatprep.subr.mxu0 0.0
  %164 = vmatpush1.msra.mxu0 %v119
  %165 = vmatprep.subr.mxu0 0.0
  %166 = vmatpush1.msra.mxu0 %v118
  %167 = vmatprep.subr.mxu0 0.0
  %168 = vmatpush1.msra.mxu0 %v117
  %169 = vmatprep.subr.mxu0 0.0
  %170 = vmatpush1.msra.mxu0 %v116
  %171 = vmatprep.subr.mxu0 0.0
  %172 = vmatpush2.msra.mxu0 0.0
  %173 = vmatprep.subr.mxu0 0.0
  %174 = vmatpush2.msra.mxu0 0.0
  %175 = vmatprep.subr.mxu0 0.0
  %176 = vmatpush2.msra.mxu0 0.0
  %177 = vmatprep.subr.mxu0 0.0
  %178 = vmatpush2.msra.mxu0 0.0
  %179 = vmatprep.subr.mxu0 0.0
  %180 = vmatpush2.msra.mxu0 0.0
  %181 = vmatprep.subr.mxu0 0.0
  %182 = vmatpush2.msra.mxu0 0.0
  %183 = vmatprep.subr.mxu0 0.0
  %184 = vmatpush2.msra.mxu0 0.0
  %185 = vmatprep.subr.mxu0 0.0
  %186 = vmatpush2.msra.mxu0 0.0
  %187 = vmatprep.subr.mxu0 0.0
  %188 = vmatpush2.msra.mxu0 0.0
  %189 = vmatprep.subr.mxu0 0.0
  %190 = vmatpush2.msra.mxu0 0.0
  %191 = vmatprep.subr.mxu0 0.0
  %192 = vmatpush2.msra.mxu0 0.0
  %193 = vmatprep.subr.mxu0 0.0
  %194 = vmatpush2.msra.mxu0 0.0
  %195 = vmatprep.subr.mxu0 0.0
  %196 = vmatpush2.msra.mxu0 0.0
  %197 = vmatprep.subr.mxu0 0.0
  %198 = vmatpush2.msra.mxu0 0.0
  %199 = vmatprep.subr.mxu0 0.0
  %200 = vmatpush2.msra.mxu0 0.0
  %201 = vmatprep.subr.mxu0 0.0
  %202 = vmatpush2.msra.mxu0 0.0
  %203 = vmatprep.mubr.f32.mxu0 0.0
  %204 = vmatmul.mubr.f32.gmra.mxu0 %v115
  %v205 = vpop.f32.mrf.mxu0
  %v206 = vadd.f32 %v137, %v205
  %v207 = vpop.f32.mrf.mxu0
  %208 = vdwg.mxu0
  %vm209 = vcmp.ge.f32.partialorder %v206, 0.0
  %v210 = vmul.f32 %v206, 0.01
  %v211 = vsel %vm209, %v206, %v210
  %v212 = vld [vmem:[%s5] sm:$0xff]
  %v213 = vld [vmem:[%s5 + $0x8] sm:$0xff]
  %v214 = vld [vmem:[%s5 + $0x10] sm:$0xff]
  %v215 = vld [vmem:[%s5 + $0x18] sm:$0xff]
  %v216 = vld [vmem:[%s5 + $0x20] sm:$0xff]
  %v217 = vld [vmem:[%s5 + $0x28] sm:$0xff]
  %v218 = vld [vmem:[%s5 + $0x30] sm:$0xff]
  %v219 = vld [vmem:[%s5 + $0x38] sm:$0xff]
  %v220 = vld [vmem:[%s5 + $0x40] sm:$0xff]
  %v221 = vld [vmem:[%s5 + $0x48] sm:$0xff]
  %v222 = vld [vmem:[%s5 + $0x50] sm:$0xff]
  %v223 = vld [vmem:[%s5 + $0x58] sm:$0xff]
  %v224 = vld [vmem:[%s5 + $0x60] sm:$0xff]
  %v225 = vld [vmem:[%s5 + $0x68] sm:$0xff]
  %v226 = vld [vmem:[%s5 + $0x70] sm:$0xff]
  %v227 = vld [vmem:[%s5 + $0x78] sm:$0xff]
  %v228 = vld [vmem:[%s6] sm:$0x1]
  %v230 = vlaneseq
  %v231 = vshrl.u32 %v230, 7
  %v232 = vsub.s32 0, %v231
  %v233 = vrot.slane %v228, %v232
  %235 = vmatprep.subr.mxu0 0.0
  %236 = vmatpush1.msra.mxu0 %v227
  %237 = vmatprep.subr.mxu0 0.0
  %238 = vmatpush1.msra.mxu0 %v226
  %239 = vmatprep.subr.mxu0 0.0
  %240 = vmatpush1.msra.mxu0 %v225
  %241 = vmatprep.subr.mxu0 0.0
  %242 = vmatpush1.msra.mxu0 %v224
  %243 = vmatprep.subr.mxu0 0.0
  %244 = vmatpush1.msra.mxu0 %v223
  %245 = vmatprep.subr.mxu0 0.0
  %246 = vmatpush1.msra.mxu0 %v222
  %247 = vmatprep.subr.mxu0 0.0
  %248 = vmatpush1.msra.mxu0 %v221
  %249 = vmatprep.subr.mxu0 0.0
  %250 = vmatpush1.msra.mxu0 %v220
  %251 = vmatprep.subr.mxu0 0.0
  %252 = vmatpush1.msra.mxu0 %v219
  %253 = vmatprep.subr.mxu0 0.0
  %254 = vmatpush1.msra.mxu0 %v218
  %255 = vmatprep.subr.mxu0 0.0
  %256 = vmatpush1.msra.mxu0 %v217
  %257 = vmatprep.subr.mxu0 0.0
  %258 = vmatpush1.msra.mxu0 %v216
  %259 = vmatprep.subr.mxu0 0.0
  %260 = vmatpush1.msra.mxu0 %v215
  %261 = vmatprep.subr.mxu0 0.0
  %262 = vmatpush1.msra.mxu0 %v214
  %263 = vmatprep.subr.mxu0 0.0
  %264 = vmatpush1.msra.mxu0 %v213
  %265 = vmatprep.subr.mxu0 0.0
  %266 = vmatpush1.msra.mxu0 %v212
  %267 = vmatprep.subr.mxu0 0.0
  %268 = vmatpush2.msra.mxu0 0.0
  %269 = vmatprep.subr.mxu0 0.0
  %270 = vmatpush2.msra.mxu0 0.0
  %271 = vmatprep.subr.mxu0 0.0
  %272 = vmatpush2.msra.mxu0 0.0
  %273 = vmatprep.subr.mxu0 0.0
  %274 = vmatpush2.msra.mxu0 0.0
  %275 = vmatprep.subr.mxu0 0.0
  %276 = vmatpush2.msra.mxu0 0.0
  %277 = vmatprep.subr.mxu0 0.0
  %278 = vmatpush2.msra.mxu0 0.0
  %279 = vmatprep.subr.mxu0 0.0
  %280 = vmatpush2.msra.mxu0 0.0
  %281 = vmatprep.subr.mxu0 0.0
  %282 = vmatpush2.msra.mxu0 0.0
  %283 = vmatprep.subr.mxu0 0.0
  %284 = vmatpush2.msra.mxu0 0.0
  %285 = vmatprep.subr.mxu0 0.0
  %286 = vmatpush2.msra.mxu0 0.0
  %287 = vmatprep.subr.mxu0 0.0
  %288 = vmatpush2.msra.mxu0 0.0
  %289 = vmatprep.subr.mxu0 0.0
  %290 = vmatpush2.msra.mxu0 0.0
  %291 = vmatprep.subr.mxu0 0.0
  %292 = vmatpush2.msra.mxu0 0.0
  %293 = vmatprep.subr.mxu0 0.0
  %294 = vmatpush2.msra.mxu0 0.0
  %295 = vmatprep.subr.mxu0 0.0
  %296 = vmatpush2.msra.mxu0 0.0
  %297 = vmatprep.subr.mxu0 0.0
  %298 = vmatpush2.msra.mxu0 0.0
  %299 = vmatprep.mubr.f32.mxu0 0.0
  %300 = vmatmul.mubr.f32.gmra.mxu0 %v211
  %v301 = vpop.f32.mrf.mxu0
  %v302 = vadd.f32 %v233, %v301
  %v303 = vpop.f32.mrf.mxu0
  %304 = vdwg.mxu0
  %vm305 = vcmask 23552
  %306 = vst.msk [vmem:[%s7] sm:$0xff] %vm305, %v302
  // Predicated region
  $region30: #{tpu_custom_call.1} parent=0 // pred_check
    _
  $region31: #{tpu_custom_call.1} parent=0 // pred_check_branch
    %308 = sbr.rel (0) target = $region33
  $region32: #{tpu_custom_call.1} parent=0 // pred_region
    _
  $region33: #{tpu_custom_call.1} parent=0 // pred_fallthru
    _
  // Predicated region
  $region34: #{tpu_custom_call.1} parent=0 // pred_check
    _
  $region35: #{tpu_custom_call.1} parent=0 // pred_check_branch
    %310 = sbr.rel (0) target = $region37
  $region36: #{tpu_custom_call.1} parent=0 // pred_region
    _
  $region37: #{tpu_custom_call.1} parent=0 // pred_fallthru
    _

</llo_original>
